<compile_context>
chip_gen: v5e
topology: v5e:2x2
jax: 0.10.0
libtpu: 0.0.40
codegen_flags: <defaults>
</compile_context>

<pallas_src>
import functools
import math

import jax
import jax.numpy as jnp
from jax.experimental import pallas as pl
from jax.experimental.pallas import tpu as pltpu


# --------------------------------------------------------------------------
# Kernel: one fused VPU pass, biased' = decay*biased + (1-decay)*tensor
# --------------------------------------------------------------------------
def _ema_biased_kernel(tensor_ref, biased_ref, biased_out_ref, *, decay):
    d = jnp.float32(decay)
    omd = jnp.float32(1.0 - decay)
    t = tensor_ref[...].astype(jnp.float32)      # native-dtype read, f32 math
    biased_out_ref[...] = d * biased_ref[...] + omd * t


# --------------------------------------------------------------------------
# Tiling helpers
# --------------------------------------------------------------------------
_TARGET_BLOCK_BYTES = 4 * 1024 * 1024   # ~4 MiB per stream per buffer
_MIN_GRID_STEPS = 4                     # keep the pipeline (and both v7x TCs) busy
_VMEM_LIMIT_BYTES = 48 * 1024 * 1024    # explicit scoped-VMEM limit (v7x-safe)


def _round_up(x, m):
    return (x + m - 1) // m * m


def _pick_tiling(n_elems):
    """(rows, cols, pad): cols is a multiple of 128; awkward sizes get padded
    to a multiple of 1024 instead of a single (1, N) block."""
    for c in (2048, 1024, 512, 256, 128):
        if n_elems % c == 0:
            return n_elems // c, c, 0
    cols = 1024
    padded = _round_up(n_elems, cols)
    return padded // cols, cols, padded - n_elems


def _pick_row_tile(rows, cols):
    """Row tile sized by target block bytes, multiple of 8, with >= ~4 grid
    steps for mid-size tensors.  Returns the full extent for tiny tensors."""
    if rows <= 8:
        return rows
    bytes_per_row = cols * 4  # f32 biased stream
    tr_bytes = max(8, (_TARGET_BLOCK_BYTES // bytes_per_row) // 8 * 8)
    tr_steps = max(8, _round_up(math.ceil(rows / _MIN_GRID_STEPS), 8))
    tr = min(tr_bytes, tr_steps)
    if tr >= rows:
        return rows
    return tr


# --------------------------------------------------------------------------
# Wrappers
# --------------------------------------------------------------------------
def ema_update(tensor, biased, accum, *, decay):
    """Pallas equivalent of EMATensor.update().

    Returns (new_biased, new_accum).  `average` is not materialized here; get
    it lazily via `ema_average` / `ema_forward(..., training=False)`.

    `decay` must be a static Python float (it is a constructor constant in the
    original module).  For true in-place update of `biased`, donate it at the
    jit boundary, e.g. jax.jit(ema_update, static_argnames=("decay",),
    donate_argnames=("biased",)); otherwise XLA inserts a defensive copy.
    """
    biased = jnp.asarray(biased, jnp.float32)      # EMA state stays f32
    tensor = jnp.asarray(tensor)                   # keep native dtype (bf16 ok)
    assert tensor.shape == biased.shape
    orig_shape = tensor.shape
    n = tensor.size

    rows, cols, pad = _pick_tiling(n)
    t_flat = tensor.reshape(-1)
    b_flat = biased.reshape(-1)
    if pad:
        t_flat = jnp.pad(t_flat, (0, pad))
        b_flat = jnp.pad(b_flat, (0, pad))
    t2 = t_flat.reshape(rows, cols)
    b2 = b_flat.reshape(rows, cols)

    tr = _pick_row_tile(rows, cols)
    grid = (pl.cdiv(rows, tr),)

    cost = pl.CostEstimate(
        flops=3 * n,
        transcendentals=0,
        bytes_accessed=n * (tensor.dtype.itemsize + 4 + 4),
    )

    new_b2 = pl.pallas_call(
        functools.partial(_ema_biased_kernel, decay=float(decay)),
        out_shape=jax.ShapeDtypeStruct((rows, cols), jnp.float32),
        grid=grid,
        in_specs=[
            pl.BlockSpec((tr, cols), lambda i: (i, 0)),   # tensor tile
            pl.BlockSpec((tr, cols), lambda i: (i, 0)),   # biased tile
        ],
        out_specs=pl.BlockSpec((tr, cols), lambda i: (i, 0)),   # biased'
        # `biased` is updated in place (torch uses mul_/add_ on the buffer).
        input_output_aliases={1: 0},
        compiler_params=pltpu.CompilerParams(
            dimension_semantics=("parallel",),
            vmem_limit_bytes=_VMEM_LIMIT_BYTES,
        ),
        cost_estimate=cost,
    )(t2, b2)

    new_flat = new_b2.reshape(-1)
    if pad:
        new_flat = new_flat[:n]
    new_biased = new_flat.reshape(orig_shape)

    # Trivial scalar math stays in XLA (don't kernelize scalar ops).
    new_accum = jnp.asarray(accum, jnp.float32) * jnp.float32(decay)
    return new_biased, new_accum


def ema_average(biased, accum):
    """Bias-corrected EMA: average = biased / (1 - accum).

    Computed lazily (plain XLA) instead of inside the update kernel — this
    cuts the bandwidth-bound update from 16 to 12 B/elem and matches the
    PyTorch division exactly (no reciprocal rounding)."""
    return biased / (1.0 - jnp.asarray(accum, jnp.float32))


def ema_forward(tensor, biased, accum, training):
    """EMATensor.forward(): the raw parameter while training, the
    bias-corrected EMA otherwise."""
    if training:
        return tensor
    return ema_average(biased, accum)


# --------------------------------------------------------------------------
# Plain-JAX reference mirroring the PyTorch module exactly
# --------------------------------------------------------------------------
def ema_update_ref(tensor, biased, accum, decay):
    accum = accum * decay
    biased = decay * biased + (1.0 - decay) * tensor
    average = biased / (1.0 - accum)
    return biased, average, accum


# --------------------------------------------------------------------------
# Self-test
# --------------------------------------------------------------------------
if __name__ == "__main__":
    key = jax.random.PRNGKey(0)
    k1, k2 = jax.random.split(key)
    decay = 0.99

    # ---- Case 1: lane-aligned f32 parameter tensor (rows=16, hidden=256) ----
    shape = (16, 256)
    tensor = jax.random.normal(k1, shape, dtype=jnp.float32)

    # __init__: biased = zeros, average = zeros, accum = 1.0, then update().
    biased = jnp.zeros(shape, jnp.float32)
    accum = jnp.float32(1.0)
    biased_ref = jnp.zeros(shape, jnp.float32)
    accum_ref = jnp.float32(1.0)
    average_ref = jnp.zeros(shape, jnp.float32)

    update_fn = jax.jit(ema_update, static_argnames=("decay",))

    # Constructor's update() plus two more training-time updates.
    for _ in range(3):
        biased, accum = update_fn(tensor, biased, accum, decay=decay)
        biased_ref, average_ref, accum_ref = ema_update_ref(
            tensor, biased_ref, accum_ref, decay
        )

    biased = jax.block_until_ready(biased)
    assert jnp.max(jnp.abs(biased - biased_ref)) < 1e-5
    assert jnp.abs(accum - accum_ref) < 1e-6

    # forward(): training -> tensor, eval -> average (lazy bias correction).
    out_train = ema_forward(tensor, biased, accum, training=True)
    out_eval = ema_forward(tensor, biased, accum, training=False)
    assert jnp.max(jnp.abs(out_train - tensor)) == 0.0
    assert jnp.max(jnp.abs(out_eval - average_ref)) < 1e-5

    # ---- Case 2: awkward shape (pad fallback) + bf16 parameter read path ----
    shape2 = (5, 7, 9)   # 315 elems: not a multiple of 128 -> padded path
    tensor2 = jax.random.normal(k2, shape2, dtype=jnp.float32).astype(jnp.bfloat16)
    biased2 = jnp.zeros(shape2, jnp.float32)
    accum2 = jnp.float32(1.0)

    new_b2, new_a2 = ema_update(tensor2, biased2, accum2, decay=decay)
    new_b2 = jax.block_until_ready(new_b2)

    # Kernel upcasts the bf16 parameter in-register; reference does the same.
    b2_ref, avg2_ref, a2_ref = ema_update_ref(
        tensor2.astype(jnp.float32), biased2, accum2, decay
    )
    assert jnp.max(jnp.abs(new_b2 - b2_ref)) < 1e-5
    assert jnp.abs(new_a2 - a2_ref) < 1e-6
    eval2 = ema_forward(tensor2, new_b2, new_a2, training=False)
    assert jnp.max(jnp.abs(eval2 - avg2_ref)) < 1e-5

    print("KERNEL_OK")
</pallas_src>

<mosaic_0001>
module attributes {stable_mosaic.version = 11 : i64} {
  func.func @_ema_biased_kernel(%arg0: i32, %arg1: memref<2x2048xf32, #tpu.memory_space<vmem>>, %arg2: memref<2x2048xf32, #tpu.memory_space<vmem>>, %arg3: memref<2x2048xf32, #tpu.memory_space<vmem>>) attributes {dimension_semantics = [#tpu.dimension_semantics<parallel>], iteration_bounds = array<i64: 1>, scalar_prefetch = 0 : i64, scratch_operands = 0 : i64, tpu.core_type = #tpu.core_type<tc>, window_params = [{transform_indices = @transform_0, window_bounds = array<i64: 2, 2048>}, {transform_indices = @transform_1, window_bounds = array<i64: 2, 2048>}, {transform_indices = @transform_2, window_bounds = array<i64: 2, 2048>}]} {
    %c0 = arith.constant 0 : index
    %c0_0 = arith.constant 0 : index
    %0 = vector.load %arg1[%c0, %c0_0] : memref<2x2048xf32, #tpu.memory_space<vmem>>, vector<2x2048xf32>
    %c0_1 = arith.constant 0 : index
    %c0_2 = arith.constant 0 : index
    %1 = vector.load %arg2[%c0_1, %c0_2] : memref<2x2048xf32, #tpu.memory_space<vmem>>, vector<2x2048xf32>
    %cst = arith.constant 9.900000e-01 : f32
    %2 = vector.broadcast %cst : f32 to vector<2x2048xf32>
    %3 = arith.mulf %2, %1 : vector<2x2048xf32>
    %cst_3 = arith.constant 0.00999999977 : f32
    %4 = vector.broadcast %cst_3 : f32 to vector<2x2048xf32>
    %5 = arith.mulf %4, %0 : vector<2x2048xf32>
    %6 = arith.addf %3, %5 : vector<2x2048xf32>
    %c0_4 = arith.constant 0 : index
    %c0_5 = arith.constant 0 : index
    %7 = vector.load %arg3[%c0_4, %c0_5] : memref<2x2048xf32, #tpu.memory_space<vmem>>, vector<2x2048xf32>
    tpu.vector_store %arg3[%c0_4, %c0_5], %6 {strides = array<i32>} : memref<2x2048xf32, #tpu.memory_space<vmem>>, vector<2x2048xf32>,
    return
  }
  func.func @transform_0(%arg0: i32) -> (i32, i32) {
    %c0_i32 = arith.constant 0 : i32
    %c0_i32_0 = arith.constant 0 : i32
    return %arg0, %c0_i32 : i32, i32
  }
  func.func @transform_1(%arg0: i32) -> (i32, i32) {
    %c0_i32 = arith.constant 0 : i32
    %c0_i32_0 = arith.constant 0 : i32
    return %arg0, %c0_i32 : i32, i32
  }
  func.func @transform_2(%arg0: i32) -> (i32, i32) {
    %c0_i32 = arith.constant 0 : i32
    %c0_i32_0 = arith.constant 0 : i32
    return %arg0, %c0_i32 : i32, i32
  }
}

</mosaic_0001>

<llo_original>
// kernel: ema_update.1
$region0: #{ema_update.1}
  #allocation0 [shape = 'u32[]', space=smem, size = 0x4, offset = 0x4, fixed_abs, tag = 'smem constant byte address 0x4 - core index']
  #allocation1 [shape = 'u32[72,128]{1,0:T(1,128)}', space=vmem, size = 0x9000, scoped, tag = 'internal scratch']
  %s0 = inlined_call_operand.vmem [shape: f32[2,2048], index: 0, kind: input, shape index: {}]
  %s1 = inlined_call_operand.vmem [shape: f32[2,2048], index: 1, kind: input, shape index: {}, may-alias: {1,2}]
  %s2 = inlined_call_operand.vmem [shape: f32[2,2048], index: 2, kind: output, shape index: {}, may-alias: {1,2}]
  %s3 = sld [smem:[#allocation0]]
  $region18: #{ema_update.1} parent=0
    _
  %s5 = ssub.s32 1, %s3
  %s6 = scalar_select 0, %s5, %s3
  // Predicated region
  $region2: #{ema_update.1} parent=0 // pred_check
    _
  $region3: #{ema_update.1} parent=0 // pred_check_branch
    %8 = sbr.rel (0) target = $region5
  $region4: #{ema_update.1} parent=0 // pred_region
    _
  $region5: #{ema_update.1} parent=0 // pred_fallthru
    _
  // Predicated region
  $region6: #{ema_update.1} parent=0 // pred_check
    _
  $region7: #{ema_update.1} parent=0 // pred_check_branch
    %10 = sbr.rel (0) target = $region9
  $region8: #{ema_update.1} parent=0 // pred_region
    _
  $region9: #{ema_update.1} parent=0 // pred_fallthru
    _
  %v11 = vld [vmem:[%s0] sm:$0xff]
  %v12 = vld [vmem:[%s0 + $0x8] sm:$0xff]
  %v13 = vld [vmem:[%s0 + $0x10] sm:$0xff]
  %v14 = vld [vmem:[%s0 + $0x18] sm:$0xff]
  %v15 = vld [vmem:[%s1] sm:$0xff]
  %v16 = vld [vmem:[%s1 + $0x8] sm:$0xff]
  %v17 = vld [vmem:[%s1 + $0x10] sm:$0xff]
  %v18 = vld [vmem:[%s1 + $0x18] sm:$0xff]
  %v19 = vmul.f32 %v15, 0.99
  %v20 = vmul.f32 %v16, 0.99
  %v21 = vmul.f32 %v17, 0.99
  %v22 = vmul.f32 %v18, 0.99
  %v23 = vmul.f32 %v11, 0.01
  %v24 = vmul.f32 %v12, 0.01
  %v25 = vmul.f32 %v13, 0.01
  %v26 = vmul.f32 %v14, 0.01
  %v27 = vadd.f32 %v19, %v23
  %v28 = vadd.f32 %v20, %v24
  %v29 = vadd.f32 %v21, %v25
  %v30 = vadd.f32 %v22, %v26
  %31 = vst [vmem:[%s2] sm:$0xff] %v27
  %32 = vst [vmem:[%s2 + $0x8] sm:$0xff] %v28
  %33 = vst [vmem:[%s2 + $0x10] sm:$0xff] %v29
  %34 = vst [vmem:[%s2 + $0x18] sm:$0xff] %v30
  // Predicated region
  $region10: #{ema_update.1} parent=0 // pred_check
    _
  $region11: #{ema_update.1} parent=0 // pred_check_branch
    %36 = sbr.rel (0) target = $region13
  $region12: #{ema_update.1} parent=0 // pred_region
    _
  $region13: #{ema_update.1} parent=0 // pred_fallthru
    _
  // Predicated region
  $region14: #{ema_update.1} parent=0 // pred_check
    _
  $region15: #{ema_update.1} parent=0 // pred_check_branch
    %38 = sbr.rel (0) target = $region17
  $region16: #{ema_update.1} parent=0 // pred_region
    _
  $region17: #{ema_update.1} parent=0 // pred_fallthru
    _

</llo_original>
